<compile_context>
chip_gen: v7x
topology: tpu7x:2x2x1
jax: 0.10.0
libtpu: 0.0.40
codegen_flags: <defaults>
</compile_context>

<pallas_src>
import functools

import jax
import jax.numpy as jnp
from jax import lax
from jax.experimental import pallas as pl
from jax.experimental.pallas import tpu as pltpu


def _round_up(n, m):
    return ((n + m - 1) // m) * m


def _cdiv(n, m):
    return -(-n // m)


def _pick_chunk(n_rows, row_chunk):
    """Largest multiple-of-8 divisor of n_rows that is <= row_chunk (else n_rows)."""
    if n_rows <= row_chunk:
        return n_rows
    for c in range((row_chunk // 8) * 8, 7, -8):
        if n_rows % c == 0:
            return c
    return n_rows


def _disc_kernel(x_ref, w1_ref, b1_ref, w2_ref, b2_ref, o_ref, *,
                 chunk, num_chunks, unroll):
    """One batch tile: sigmoid(relu(x @ W1 + b1) . w2 + b2), lane-dense output."""
    w1 = w1_ref[...]                                  # (latent, hidden), MXU operand
    b1 = b1_ref[...].astype(jnp.float32)              # (1, hidden)
    w2 = w2_ref[...].astype(jnp.float32)              # (1, hidden)
    b2 = b2_ref[0, 0]                                 # scalar bias, SMEM

    def body(c, carry):
        start = c * chunk
        if chunk % 8 == 0:
            start = pl.multiple_of(start, chunk)
        xc = x_ref[pl.ds(start, chunk), :]             # (chunk, latent)
        # fc1 on the MXU (f32 accumulation); bias + ReLU on the VPU.
        h = jnp.dot(xc, w1, preferred_element_type=jnp.float32)
        h = jnp.maximum(h + b1, 0.0)                   # (chunk, hidden), f32
        # fc2 (out_features == 1): VPU multiply + XLU lane-reduce (no N=1 matmul).
        logit = jnp.sum(h * w2, axis=-1) + b2          # (chunk,), lane-major
        row = jax.nn.sigmoid(logit).astype(o_ref.dtype)
        # Lane-dense store: the chunk's rows occupy the lane axis of the output
        # block -> ~chunk/128 stores instead of chunk/8 lane-masked stores.
        o_ref[:, pl.ds(c, 1), :] = jnp.reshape(row, (1, 1, chunk))
        return carry

    lax.fori_loop(0, num_chunks, body, 0, unroll=unroll)


def discriminator_forward(x, w1, b1, w2, b2, *, tile_b=4096, row_chunk=512,
                          min_tiles=8):
    """x: (B, latent_dim) -> (B, 1).

    w1: (latent_dim, hidden), b1: (hidden,), w2: (hidden, 1), b2: (1,).
    x / w1 are consumed in whatever dtype they arrive in (store them as bf16
    upstream to halve the dominant HBM read); accumulation and all elementwise
    math are f32; output dtype follows x.
    """
    B, latent_dim = x.shape
    hidden_dim = w1.shape[1]
    out_dtype = x.dtype

    # ---- batch tile (tb), inner row-chunk, grid size -------------------------
    row_chunk = max(8, (row_chunk // 8) * 8)
    if B <= row_chunk:
        tb, chunk = B, B                              # block == full array
    elif B <= tile_b and B <= min_tiles * row_chunk:
        tb, chunk = B, _pick_chunk(B, row_chunk)      # one tile, chunked inner loop
    else:
        # Multi-tile: tb a multiple of row_chunk, capped so the batch axis still
        # yields >= min_tiles grid steps (v7x megacore load balance).
        chunk = row_chunk
        tb = max(chunk, (min(tile_b, B) // chunk) * chunk)
        tb = max(chunk, min(tb, _round_up(_cdiv(B, min_tiles), chunk)))
    num_chunks = tb // chunk
    num_tiles = _cdiv(B, tb)      # no jnp.pad of x: ragged last block handled by
                                  # Pallas edge-block padding (rows >= B discarded)

    if num_chunks <= 2:
        unroll = True
    elif num_chunks % 2 == 0:
        unroll = 2
    else:
        unroll = 1

    kernel = functools.partial(_disc_kernel, chunk=chunk, num_chunks=num_chunks,
                               unroll=unroll)

    b1_row = b1.reshape(1, hidden_dim)
    w2_row = w2.reshape(1, hidden_dim)                # (hidden, 1) -> (1, hidden)
    b2_smem = jnp.asarray(b2, jnp.float32).reshape(1, 1)

    # VMEM budget (double-buffered, lane/sublane-padded tiles) with headroom, so
    # large tiles don't trip the scoped-VMEM default; capped below v7x's 64 MiB/TC.
    bx = jnp.dtype(x.dtype).itemsize
    bw = jnp.dtype(w1.dtype).itemsize
    bo = jnp.dtype(out_dtype).itemsize
    vmem_est = (
        2 * tb * _round_up(latent_dim, 128) * bx                          # x tile
        + 2 * _round_up(num_chunks, 8) * _round_up(chunk, 128) * bo       # out tile
        + 2 * _round_up(latent_dim, 8) * _round_up(hidden_dim, 128) * bw  # W1
        + 4 * 8 * _round_up(hidden_dim, 128) * 4                          # b1, w2 rows
        + 2 * _round_up(chunk, 8) * _round_up(hidden_dim, 128) * 4        # h (+ slack)
    )
    vmem_limit = int(min(max(32 << 20, 1.5 * vmem_est + (4 << 20)), 60 << 20))

    out = pl.pallas_call(
        kernel,
        out_shape=jax.ShapeDtypeStruct((num_tiles, num_chunks, chunk), out_dtype),
        grid=(num_tiles,),
        in_specs=[
            # x: one (tb, latent) tile per step -> double-buffered HBM reads.
            pl.BlockSpec((tb, latent_dim), lambda i: (i, 0)),
            # Weights / biases: same block every step -> stay VMEM-resident.
            pl.BlockSpec((latent_dim, hidden_dim), lambda i: (0, 0)),
            pl.BlockSpec((1, hidden_dim), lambda i: (0, 0)),
            pl.BlockSpec((1, hidden_dim), lambda i: (0, 0)),
            # b2 scalar lives in SMEM (no padded VMEM tile / vector load).
            pl.BlockSpec(memory_space=pltpu.MemorySpace.SMEM),
        ],
        # Lane-dense output layout; reshaped back to (B, 1) below.
        out_specs=pl.BlockSpec((1, num_chunks, chunk), lambda i: (i, 0, 0)),
        compiler_params=pltpu.CompilerParams(
            dimension_semantics=("parallel",),        # megacore sharding on v7x
            vmem_limit_bytes=vmem_limit,
        ),
    )(x, w1, b1_row, w2_row, b2_smem)

    return out.reshape(num_tiles * tb)[:B].reshape(B, 1)


def init_params(key, latent_dim, hidden_dim, dtype=jnp.float32):
    # PyTorch nn.Linear default init: U(-1/sqrt(fan_in), 1/sqrt(fan_in)).
    k1, k2, k3, k4 = jax.random.split(key, 4)
    lim1 = 1.0 / (latent_dim ** 0.5)
    lim2 = 1.0 / (hidden_dim ** 0.5)
    w1 = jax.random.uniform(k1, (latent_dim, hidden_dim), dtype, -lim1, lim1)
    b1 = jax.random.uniform(k2, (hidden_dim,), dtype, -lim1, lim1)
    w2 = jax.random.uniform(k3, (hidden_dim, 1), dtype, -lim2, lim2)
    b2 = jax.random.uniform(k4, (1,), dtype, -lim2, lim2)
    return w1, b1, w2, b2


def _ref_forward(x, w1, b1, w2, b2):
    return jax.nn.sigmoid(jnp.maximum(x @ w1 + b1, 0.0) @ w2 + b2)


if __name__ == "__main__":
    latent_dim, hidden_dim, batch = 32, 64, 8

    key = jax.random.PRNGKey(0)
    kx, kp = jax.random.split(key)
    x = jax.random.normal(kx, (batch, latent_dim), jnp.float32)
    w1, b1, w2, b2 = init_params(kp, latent_dim, hidden_dim)
    ref = _ref_forward(x, w1, b1, w2, b2)

    # f32 path, tiny batch (single tile, single chunk).
    out = jax.block_until_ready(discriminator_forward(x, w1, b1, w2, b2))
    assert out.shape == (batch, 1)
    assert jnp.allclose(out, ref, atol=1e-5, rtol=1e-5)

    # bf16 inputs: as if the producer already stores x / W1 in bf16 — no
    # wrapper-side cast inside discriminator_forward, so no extra HBM pass.
    out16 = jax.block_until_ready(
        discriminator_forward(x.astype(jnp.bfloat16), w1.astype(jnp.bfloat16),
                              b1, w2, b2))
    assert out16.shape == (batch, 1)
    assert jnp.allclose(out16.astype(jnp.float32), ref, atol=2e-2, rtol=2e-2)

    # Ragged batch, multi-tile path (edge x block handled without jnp.pad).
    xb = jax.random.normal(kx, (37, latent_dim), jnp.float32)
    refb = _ref_forward(xb, w1, b1, w2, b2)
    outb = jax.block_until_ready(
        discriminator_forward(xb, w1, b1, w2, b2, tile_b=16, row_chunk=8))
    assert outb.shape == (37, 1)
    assert jnp.allclose(outb, refb, atol=1e-5, rtol=1e-5)

    # Single bigger tile with a chunked inner loop + lane-dense stores.
    xc = jax.random.normal(kx, (1200, latent_dim), jnp.float32)
    refc = _ref_forward(xc, w1, b1, w2, b2)
    outc = jax.block_until_ready(discriminator_forward(xc, w1, b1, w2, b2))
    assert outc.shape == (1200, 1)
    assert jnp.allclose(outc, refc, atol=1e-5, rtol=1e-5)

    print("KERNEL_OK")
</pallas_src>

<mosaic_0001>
module attributes {stable_mosaic.version = 11 : i64} {
  func.func @_disc_kernel(%arg0: i32, %arg1: memref<8x32xf32, #tpu.memory_space<vmem>>, %arg2: memref<32x64xf32, #tpu.memory_space<vmem>>, %arg3: memref<1x64xf32, #tpu.memory_space<vmem>>, %arg4: memref<1x64xf32, #tpu.memory_space<vmem>>, %arg5: memref<1x1xf32, #tpu.memory_space<smem>>, %arg6: memref<1x1x8xf32, #tpu.memory_space<vmem>>) attributes {dimension_semantics = [#tpu.dimension_semantics<parallel>], iteration_bounds = array<i64: 1>, scalar_prefetch = 0 : i64, scratch_operands = 0 : i64, tpu.core_type = #tpu.core_type<tc>, window_params = [{transform_indices = @transform_0, window_bounds = array<i64: 8, 32>}, {pipeline_mode = #tpu.pipeline_mode<synchronous>, transform_indices = @transform_1, window_bounds = array<i64: 32, 64>}, {pipeline_mode = #tpu.pipeline_mode<synchronous>, transform_indices = @transform_2, window_bounds = array<i64: 1, 64>}, {pipeline_mode = #tpu.pipeline_mode<synchronous>, transform_indices = @transform_3, window_bounds = array<i64: 1, 64>}, {transform_indices = @transform_4, window_bounds = array<i64: 1, 1>}, {transform_indices = @transform_5, window_bounds = array<i64: 1, 1, 8>}]} {
    %c0 = arith.constant 0 : index
    %c0_0 = arith.constant 0 : index
    %0 = vector.load %arg2[%c0, %c0_0] : memref<32x64xf32, #tpu.memory_space<vmem>>, vector<32x64xf32>
    %c0_1 = arith.constant 0 : index
    %c0_2 = arith.constant 0 : index
    %1 = vector.load %arg3[%c0_1, %c0_2] : memref<1x64xf32, #tpu.memory_space<vmem>>, vector<1x64xf32>
    %c0_3 = arith.constant 0 : index
    %c0_4 = arith.constant 0 : index
    %2 = vector.load %arg4[%c0_3, %c0_4] : memref<1x64xf32, #tpu.memory_space<vmem>>, vector<1x64xf32>
    %c0_5 = arith.constant 0 : index
    %c0_6 = arith.constant 0 : index
    %3 = memref.load %arg5[%c0_5, %c0_6] : memref<1x1xf32, #tpu.memory_space<smem>>
    %c0_i32 = arith.constant 0 : i32
    %c8_i32 = arith.constant 8 : i32
    %4 = arith.muli %c0_i32, %c8_i32 : i32
    %5 = tpu.assume_multiple %4, 8 : i32
    %6 = arith.index_cast %5 : i32 to index
    %c0_7 = arith.constant 0 : index
    %7 = vector.load %arg1[%6, %c0_7] : memref<8x32xf32, #tpu.memory_space<vmem>>, vector<8x32xf32>
    %cst = arith.constant dense<0.000000e+00> : vector<8x64xf32>
    %8 = tpu.matmul %7, %0, %cst {dimension_numbers = #tpu.dot_dimension_numbers<[1], [0], [0], [1], [0, 0, 1, 1], [], []>} : vector<8x32xf32>, vector<32x64xf32>, vector<8x64xf32> -> vector<8x64xf32>
    %9 = vector.broadcast %1 : vector<1x64xf32> to vector<8x64xf32>
    %10 = arith.addf %8, %9 : vector<8x64xf32>
    %cst_8 = arith.constant 0.000000e+00 : f32
    %11 = vector.broadcast %cst_8 : f32 to vector<8x64xf32>
    %12 = arith.maximumf %10, %11 : vector<8x64xf32>
    %13 = vector.broadcast %2 : vector<1x64xf32> to vector<8x64xf32>
    %14 = arith.mulf %12, %13 : vector<8x64xf32>
    %cst_9 = arith.constant dense<0.000000e+00> : vector<8xf32>
    %15 = vector.multi_reduction <add>, %14, %cst_9 [1] : vector<8x64xf32> to vector<8xf32>
    %16 = vector.broadcast %3 : f32 to vector<8xf32>
    %17 = arith.addf %15, %16 : vector<8xf32>
    %18 = arith.negf %17 : vector<8xf32>
    %19 = math.exp %18 : vector<8xf32>
    %cst_10 = arith.constant 1.000000e+00 : f32
    %20 = vector.broadcast %cst_10 : f32 to vector<8xf32>
    %21 = arith.addf %20, %19 : vector<8xf32>
    %22 = arith.divf %20, %21 : vector<8xf32>
    %23 = vector.shape_cast %22 : vector<8xf32> to vector<1x1x8xf32>
    %c0_11 = arith.constant 0 : index
    %24 = arith.index_cast %c0_i32 : i32 to index
    %c0_12 = arith.constant 0 : index
    %25 = vector.load %arg6[%c0_11, %24, %c0_12] : memref<1x1x8xf32, #tpu.memory_space<vmem>>, vector<1x1x8xf32>
    tpu.vector_store %arg6[%c0_11, %24, %c0_12], %23 {strides = array<i32>} : memref<1x1x8xf32, #tpu.memory_space<vmem>>, vector<1x1x8xf32>,
    %c1_i32 = arith.constant 1 : i32
    return
  }
  func.func @transform_0(%arg0: i32) -> (i32, i32) {
    %c0_i32 = arith.constant 0 : i32
    %c0_i32_0 = arith.constant 0 : i32
    return %arg0, %c0_i32 : i32, i32
  }
  func.func @transform_1(%arg0: i32) -> (i32, i32) {
    %c0_i32 = arith.constant 0 : i32
    %c0_i32_0 = arith.constant 0 : i32
    %c0_i32_1 = arith.constant 0 : i32
    return %c0_i32, %c0_i32_0 : i32, i32
  }
  func.func @transform_2(%arg0: i32) -> (i32, i32) {
    %c0_i32 = arith.constant 0 : i32
    %c0_i32_0 = arith.constant 0 : i32
    %c0_i32_1 = arith.constant 0 : i32
    return %c0_i32, %c0_i32_0 : i32, i32
  }
  func.func @transform_3(%arg0: i32) -> (i32, i32) {
    %c0_i32 = arith.constant 0 : i32
    %c0_i32_0 = arith.constant 0 : i32
    %c0_i32_1 = arith.constant 0 : i32
    return %c0_i32, %c0_i32_0 : i32, i32
  }
  func.func @transform_4(%arg0: i32) -> (i32, i32) {
    %c0_i32 = arith.constant 0 : i32
    %c0_i32_0 = arith.constant 0 : i32
    %c0_i32_1 = arith.constant 0 : i32
    return %c0_i32, %c0_i32_0 : i32, i32
  }
  func.func @transform_5(%arg0: i32) -> (i32, i32, i32) {
    %c0_i32 = arith.constant 0 : i32
    %c0_i32_0 = arith.constant 0 : i32
    %c0_i32_1 = arith.constant 0 : i32
    return %arg0, %c0_i32, %c0_i32_0 : i32, i32, i32
  }
}

</mosaic_0001>

<llo_original>
// kernel: tpu_custom_call.1
$region0: #{tpu_custom_call.1}
  #allocation0 [shape = 'u32[]', space=smem, size = 0x4, offset = 0x4, fixed_abs, tag = 'smem constant byte address 0x4 - core index']
  #allocation1 [shape = 'u32[144,128]{1,0:T(1,128)}', space=vmem, size = 0x12000, scoped, tag = 'internal scratch']
  #allocation2 [shape = 'f32[1,1]{1,0:T(1,128)S(6)}', space=smem, size = 0x200, scoped, tag = 'scoped memory for tpu_custom_call.1']
  %s0 = inlined_call_operand.hbm [shape: f32[8,32], index: 0, kind: input, shape index: {}]
  %s1 = inlined_call_operand.hbm [shape: f32[32,64], index: 1, kind: input, shape index: {}]
  %s2 = inlined_call_operand.vmem [shape: f32[1,64], index: 2, kind: input, shape index: {}]
  %s3 = inlined_call_operand.vmem [shape: f32[1,64], index: 3, kind: input, shape index: {}]
  %s4 = inlined_call_operand.<no memory space> [shape: f32[1,1], index: 4, kind: input, shape index: {}]
  %s5 = inlined_call_operand.hbm [shape: f32[1,1,8], index: 5, kind: output, shape index: {}]
  %s6 = sld [smem:[#allocation0]]
  $region38: #{tpu_custom_call.1} parent=0
    _
  %s8 = ssub.s32 1, %s6
  %s9 = scalar_select 0, %s8, %s6
  %10 = sst [smem:[#allocation2]] %s4
  $region1: #{tpu_custom_call.1} parent=0
    #allocation3 [shape = 'u8[4096]{0}', space=vmem, size = 0x1000, scoped, tag = 'input window, operand 0, single buffered']
    #allocation4 [shape = 's32[1]{0}', space=sflag, size = 0x4, scoped, tag = 'scoped memory for tpu_custom_call.1']
    #allocation5 [shape = 's32[1]{0}', space=sflag, size = 0x4, scoped, tag = 'scoped memory for tpu_custom_call.1']
    #allocation6 [shape = 'u8[16384]{0}', space=vmem, size = 0x4000, scoped, tag = 'input window, operand 1, single buffered']
    #allocation7 [shape = 's32[1]{0}', space=sflag, size = 0x4, scoped, tag = 'scoped memory for tpu_custom_call.1']
    #allocation8 [shape = 'u8[512]{0}', space=vmem, size = 0x400, scoped, tag = 'output window, operand 0, single buffered']
    %11 = vsyncpa [#allocation4], 0
    %12 = vsyncpa [#allocation7], 0
    %13 = vsyncpa [#allocation5], 0
    // Predicated region
    $region2: #{tpu_custom_call.1} parent=1 // pred_check
      _
    $region3: #{tpu_custom_call.1} parent=1 // pred_check_branch
      %15 = sbr.rel (0) target = $region5
    $region4: #{tpu_custom_call.1} parent=1 // pred_region
      %s17 = ssub.s32 128, 128
      %18 = vsyncadd [#allocation4], %s17
      %s20 = sshll.u32 [#allocation3], 4
      %s21 = int_to_ptr.vmem [resolvable:$true] %s20
      %23 = dma.hbm_to_vmem [thread:$0]  %s0, 128, %s21, [#allocation4]
    $region5: #{tpu_custom_call.1} parent=1 // pred_fallthru
      _
    // Predicated region
    $region6: #{tpu_custom_call.1} parent=1 // pred_check
      _
    $region7: #{tpu_custom_call.1} parent=1 // pred_check_branch
      %25 = sbr.rel (0) target = $region9
    $region8: #{tpu_custom_call.1} parent=1 // pred_region
      %s27 = ssub.s32 512, 512
      %28 = vsyncadd [#allocation7], %s27
      %s29 = sshll.u32 [#allocation6], 4
      %s30 = int_to_ptr.vmem [resolvable:$true] %s29
      %35 = dma.hbm_to_vmem [thread:$0]  %s1, 512, %s30, [#allocation7], 128, 128, 8
    $region9: #{tpu_custom_call.1} parent=1 // pred_fallthru
      _
    // Predicated region
    $region10: #{tpu_custom_call.1} parent=1 // pred_check
      _
    $region11: #{tpu_custom_call.1} parent=1 // pred_check_branch
      %37 = sbr.rel (0) target = $region13
    $region12: #{tpu_custom_call.1} parent=1 // pred_region
      _
    $region13: #{tpu_custom_call.1} parent=1 // pred_fallthru
      _
    // Predicated region
    $region14: #{tpu_custom_call.1} parent=1 // pred_check
      _
    $region15: #{tpu_custom_call.1} parent=1 // pred_check_branch
      %39 = sbr.rel (0) target = $region17
    $region16: #{tpu_custom_call.1} parent=1 // pred_region
      _
    $region17: #{tpu_custom_call.1} parent=1 // pred_fallthru
      _
    // Predicated region
    $region18: #{tpu_custom_call.1} parent=1 // pred_check
      _
    $region19: #{tpu_custom_call.1} parent=1 // pred_check_branch
      %41 = sbr.rel (0) target = $region21
    $region20: #{tpu_custom_call.1} parent=1 // pred_region
      _
    $region21: #{tpu_custom_call.1} parent=1 // pred_fallthru
      _
    // Predicated region
    $region22: #{tpu_custom_call.1} parent=1 // pred_check
      _
    $region23: #{tpu_custom_call.1} parent=1 // pred_check_branch
      %43 = sbr.rel (0) target = $region25
    $region24: #{tpu_custom_call.1} parent=1 // pred_region
      %44 = dma.done [#allocation4], 128
    $region25: #{tpu_custom_call.1} parent=1 // pred_fallthru
      _
    // Predicated region
    $region26: #{tpu_custom_call.1} parent=1 // pred_check
      _
    $region27: #{tpu_custom_call.1} parent=1 // pred_check_branch
      %46 = sbr.rel (0) target = $region29
    $region28: #{tpu_custom_call.1} parent=1 // pred_region
      %47 = dma.done [#allocation7], 512
    $region29: #{tpu_custom_call.1} parent=1 // pred_fallthru
      _
    %v48 = vld [vmem:[#allocation6] sm:$0xff]
    %v49 = vld [vmem:[#allocation6 + $0x8] sm:$0xff]
    %v50 = vld [vmem:[#allocation6 + $0x10] sm:$0xff]
    %v51 = vld [vmem:[#allocation6 + $0x18] sm:$0xff]
    %v52 = vld [vmem:[%s2] sm:$0x1]
    %v53 = vld [vmem:[%s3] sm:$0x1]
    %s54 = sld [smem:[#allocation2]]
    %v55 = vld [vmem:[#allocation3] sm:$0xff]
    %v57 = vlaneseq
    %v58 = vshrl.u32 %v57, 7
    %v59 = vsub.s32 0, %v58
    %v60 = vrot.slane %v52, %v59
    %vm62 = vcmask 261120
    %v64 = vsel %vm62, %v55, 0
    %66 = vmatprep.subr.mxu0 0.0
    %67 = vmatpush1.msra.mxu0 %v48
    %68 = vmatprep.subr.mxu0 0.0
    %69 = vmatpush1.msra.mxu0 %v49
    %70 = vmatprep.subr.mxu0 0.0
    %71 = vmatpush1.msra.mxu0 %v50
    %72 = vmatprep.subr.mxu0 0.0
    %73 = vmatpush1.msra.mxu0 %v51
    %74 = vmatprep.subr.mxu0 0.0
    %75 = vmatpush1.msra.mxu0 0.0
    %76 = vmatprep.subr.mxu0 0.0
    %77 = vmatpush1.msra.mxu0 0.0
    %78 = vmatprep.subr.mxu0 0.0
    %79 = vmatpush1.msra.mxu0 0.0
    %80 = vmatprep.subr.mxu0 0.0
    %81 = vmatpush1.msra.mxu0 0.0
    %82 = vmatprep.subr.mxu0 0.0
    %83 = vmatpush1.msra.mxu0 0.0
    %84 = vmatprep.subr.mxu0 0.0
    %85 = vmatpush1.msra.mxu0 0.0
    %86 = vmatprep.subr.mxu0 0.0
    %87 = vmatpush1.msra.mxu0 0.0
    %88 = vmatprep.subr.mxu0 0.0
    %89 = vmatpush1.msra.mxu0 0.0
    %90 = vmatprep.subr.mxu0 0.0
    %91 = vmatpush1.msra.mxu0 0.0
    %92 = vmatprep.subr.mxu0 0.0
    %93 = vmatpush1.msra.mxu0 0.0
    %94 = vmatprep.subr.mxu0 0.0
    %95 = vmatpush1.msra.mxu0 0.0
    %96 = vmatprep.subr.mxu0 0.0
    %97 = vmatpush1.msra.mxu0 0.0
    %98 = vmatprep.subr.mxu0 0.0
    %99 = vmatpush1.msra.mxu0 0.0
    %100 = vmatprep.subr.mxu0 0.0
    %101 = vmatpush1.msra.mxu0 0.0
    %102 = vmatprep.subr.mxu0 0.0
    %103 = vmatpush1.msra.mxu0 0.0
    %104 = vmatprep.subr.mxu0 0.0
    %105 = vmatpush1.msra.mxu0 0.0
    %106 = vmatprep.subr.mxu0 0.0
    %107 = vmatpush1.msra.mxu0 0.0
    %108 = vmatprep.subr.mxu0 0.0
    %109 = vmatpush1.msra.mxu0 0.0
    %110 = vmatprep.subr.mxu0 0.0
    %111 = vmatpush1.msra.mxu0 0.0
    %112 = vmatprep.subr.mxu0 0.0
    %113 = vmatpush1.msra.mxu0 0.0
    %114 = vmatprep.subr.mxu0 0.0
    %115 = vmatpush1.msra.mxu0 0.0
    %116 = vmatprep.subr.mxu0 0.0
    %117 = vmatpush1.msra.mxu0 0.0
    %118 = vmatprep.subr.mxu0 0.0
    %119 = vmatpush1.msra.mxu0 0.0
    %120 = vmatprep.subr.mxu0 0.0
    %121 = vmatpush1.msra.mxu0 0.0
    %122 = vmatprep.subr.mxu0 0.0
    %123 = vmatpush1.msra.mxu0 0.0
    %124 = vmatprep.subr.mxu0 0.0
    %125 = vmatpush1.msra.mxu0 0.0
    %126 = vmatprep.subr.mxu0 0.0
    %127 = vmatpush1.msra.mxu0 0.0
    %128 = vmatprep.subr.mxu0 0.0
    %129 = vmatpush1.msra.mxu0 0.0
    %130 = vmatprep.mubr.f32.mxu0 0.0
    %131 = vmatmul.mubr.f32.gmra.mrb[0].mxu0 %v64
    %v132 = vpop.f32.mrb[0].mxu0
    %v133 = vadd.f32 %v60, %v132
    %v134 = vpop.f32.mrb[0].mxu0
    %135 = vdwg.mxu0
    %v136 = vmax.f32 %v133, 0.0
    %v138 = vlaneseq
    %v139 = vshrl.u32 %v138, 7
    %v140 = vsub.s32 0, %v139
    %v141 = vrot.slane %v53, %v140
    %v143 = vmul.f32 %v136, %v141
    %vm144 = vcmask 523264
    %v145 = vsel %vm144, %v143, 0.0
    %146 = vadd.xlane.f32.xlu0 %v145
    %v147 = vpop.xlane.xlu0 %146
    %v148 = vstv %s54
    %v149 = vadd.f32 %v147, %v148
    %v150 = vxor.u32 %v149, 2147483648
    %v151 = vmul.f32 %v150, 1.442695
    %v152 = vpow.pop %v151
    %v153 = vadd.f32 %v152, 1.0
    %v154 = vrcp.pop %v153
    %v155 = vmul.f32 1.0, %v154
    %v157 = vlaneseq
    %v158 = vand.u32 %v157, 127
    %v159 = vlaneseq
    %v160 = vshrl.u32 %v159, 7
    %v161 = vsub.s32 %v158, %v160
    %v162 = vrot.slane %v155, %v161
    %vm164 = vcmask 57344
    %165 = vst.msk [vmem:[#allocation8] sm:$0x1] %vm164, %v162
    // Predicated region
    $region30: #{tpu_custom_call.1} parent=1 // pred_check
      _
    $region31: #{tpu_custom_call.1} parent=1 // pred_check_branch
      %167 = sbr.rel (0) target = $region33
    $region32: #{tpu_custom_call.1} parent=1 // pred_region
      %s169 = ssub.s32 16, 16
      %170 = vsyncadd [#allocation5], %s169
      %s172 = sshll.u32 [#allocation8], 4
      %s173 = int_to_ptr.vmem [resolvable:$true] %s172
      %175 = dma.vmem_to_hbm [thread:$0]  %s173, 16, %s5, [#allocation5]
    $region33: #{tpu_custom_call.1} parent=1 // pred_fallthru
      _
    // Predicated region
    $region34: #{tpu_custom_call.1} parent=1 // pred_check
      _
    $region35: #{tpu_custom_call.1} parent=1 // pred_check_branch
      %177 = sbr.rel (0) target = $region37
    $region36: #{tpu_custom_call.1} parent=1 // pred_region
      %178 = dma.done [#allocation5], 16
    $region37: #{tpu_custom_call.1} parent=1 // pred_fallthru
      _
    %179 = vsyncpa [#allocation4], 1
    %180 = vsyncpa [#allocation7], 1
    %181 = vsyncpa [#allocation5], 1

</llo_original>
